<compile_context>
chip_gen: v7x
topology: tpu7x:2x2x1
jax: 0.10.0
libtpu: 0.0.40
codegen_flags: <defaults>
</compile_context>

<pallas_src>
import jax
import jax.numpy as jnp
from jax.experimental import pallas as pl
from jax.experimental.pallas import tpu as pltpu


def _round_up(x, m):
    return ((x + m - 1) // m) * m


def al_ch_kernel(x_ref, att_ref, w1a_ref, w1p_ref, b1_ref, w2_ref, b2_ref, out_ref):
    """One grid step == one batch element's (C, H*W) slab."""
    x = x_ref[0].astype(jnp.float32)                  # (C, HW), lane-dense
    att = att_ref[0].astype(jnp.float32)              # (A, 1) column

    # AdaptiveAvgPool2d(1): single lane-reduce over the fused H*W axis.
    pooled = jnp.mean(x, axis=-1, keepdims=True)      # (C, 1)

    # FC1 over cat(attention, pooled), column-oriented:
    #   h = W1[:, :A] @ att + W1[:, A:] @ pooled + b1   (hidden padded to 128 w/ zeros)
    h = (jnp.dot(w1a_ref[...], att, preferred_element_type=jnp.float32)
         + jnp.dot(w1p_ref[...], pooled, preferred_element_type=jnp.float32)
         + b1_ref[...])                               # (Hpad, 1)
    h = jnp.maximum(h, 0.0)                           # ReLU

    # FC2 + sigmoid -> per-channel gates.
    g = jnp.dot(w2_ref[...], h, preferred_element_type=jnp.float32) + b2_ref[...]
    g = jax.nn.sigmoid(g)                             # (C, 1)

    # out = gate.view(C, 1) * inputs  (broadcast over the lane axis).
    out_ref[0] = (x * g).astype(out_ref.dtype)


def al_en_forward(x, attention, params):
    """AL_En_Module.forward: only the channel-attention branch is used."""
    B, C, H, W = x.shape
    HW = H * W
    A = attention.shape[1]
    w1a_c, w1p_c, b1_c, w2_c, b2_c = params
    hidden_pad = w1a_c.shape[0]

    # Lane-dense layouts (pure wrapper-side plumbing, no copies of substance).
    x3 = x.reshape(B, C, HW)                 # (B, C, H*W)
    att3 = attention.reshape(B, A, 1)        # per-batch attention column

    block_bytes = C * HW * x.dtype.itemsize
    param_bytes = sum(int(p.nbytes) for p in params)
    # double-buffered in + out slabs + resident params + slack, clamped to a
    # range that is safe on v5e/v6e (128 MiB) and v7x (64 MiB physical).
    vmem_limit = int(min(64 << 20,
                         max(32 << 20,
                             4 * block_bytes + 2 * (param_bytes + att3.nbytes)
                             + (2 << 20))))

    cost = pl.CostEstimate(
        flops=int(2 * B * hidden_pad * (A + 2 * C) + 3 * B * C * HW),
        transcendentals=int(B * C),                          # sigmoid
        bytes_accessed=int(2 * x.nbytes + attention.nbytes + param_bytes),
    )

    out = pl.pallas_call(
        al_ch_kernel,
        out_shape=jax.ShapeDtypeStruct((B, C, HW), x.dtype),
        grid_spec=pltpu.PrefetchScalarGridSpec(
            num_scalar_prefetch=0,
            grid=(B,),
            in_specs=[
                pl.BlockSpec((1, C, HW), lambda b: (b, 0, 0)),     # x slab (pipelined)
                pl.BlockSpec((1, A, 1), lambda b: (b, 0, 0)),      # attention column
                pl.BlockSpec((hidden_pad, A), lambda b: (0, 0)),   # FC1 w (attention part)
                pl.BlockSpec((hidden_pad, C), lambda b: (0, 0)),   # FC1 w (pooled part)
                pl.BlockSpec((hidden_pad, 1), lambda b: (0, 0)),   # FC1 bias
                pl.BlockSpec((C, hidden_pad), lambda b: (0, 0)),   # FC2 w
                pl.BlockSpec((C, 1), lambda b: (0, 0)),            # FC2 bias
            ],
            out_specs=pl.BlockSpec((1, C, HW), lambda b: (b, 0, 0)),
        ),
        compiler_params=pltpu.CompilerParams(
            dimension_semantics=("parallel",),
            vmem_limit_bytes=vmem_limit,
        ),
        cost_estimate=cost,
    )(x3, att3, w1a_c, w1p_c, b1_c, w2_c, b2_c)

    return out.reshape(B, C, H, W)


def make_params(key, attention_size, channel_size):
    """Synthetic parameters matching AL_CH_Module's Linear layers.

    PyTorch: FC_1 = Linear(C + A, C//16), FC_2 = Linear(C//16, C); y = x @ W.T + b.
    Stored column-oriented with hidden zero-padded to a 128 multiple (exact math:
    padded rows give ReLU(0)=0 and multiply zero columns of FC2).
    """
    hidden = channel_size // 16
    hidden_pad = _round_up(max(hidden, 1), 128)
    k1, k2, k3, k4 = jax.random.split(key, 4)
    w1 = jax.random.normal(k1, (hidden, channel_size + attention_size), jnp.float32) * 0.05
    b1 = jax.random.normal(k2, (hidden,), jnp.float32) * 0.05
    w2 = jax.random.normal(k3, (channel_size, hidden), jnp.float32) * 0.05
    b2 = jax.random.normal(k4, (channel_size,), jnp.float32) * 0.05

    pad = hidden_pad - hidden
    # cat order in forward is (attention, pooled) -> first A input cols act on attention.
    w1a_c = jnp.pad(w1[:, :attention_size], ((0, pad), (0, 0)))   # (Hpad, A)
    w1p_c = jnp.pad(w1[:, attention_size:], ((0, pad), (0, 0)))   # (Hpad, C)
    b1_c = jnp.pad(b1, (0, pad)).reshape(hidden_pad, 1)           # (Hpad, 1)
    w2_c = jnp.pad(w2, ((0, 0), (0, pad)))                        # (C, Hpad)
    b2_c = b2.reshape(channel_size, 1)                            # (C, 1)
    return (w1a_c, w1p_c, b1_c, w2_c, b2_c)

    # TODO(synk): AL_En_Module also constructs Spatial_attention (AL_SP_Module),
    # but its forward never calls it, so it is intentionally omitted.


def reference_forward(x, attention, params):
    """Pure-JAX reference mirroring the PyTorch forward (uses the same padded params)."""
    w1a_c, w1p_c, b1_c, w2_c, b2_c = params
    pooled = jnp.mean(x, axis=(2, 3))                              # (B, C)
    h = jax.nn.relu(attention @ w1a_c.T + pooled @ w1p_c.T + b1_c[:, 0])
    g = jax.nn.sigmoid(h @ w2_c.T + b2_c[:, 0])
    return x * g[:, :, None, None]


if __name__ == "__main__":
    # Small shapes consistent with the module (channel_size must be >= 16 for C//16).
    B, C, H, W = 2, 64, 16, 16
    ATT = 32

    key = jax.random.PRNGKey(0)
    kx, ka, kp = jax.random.split(key, 3)
    x = jax.random.normal(kx, (B, C, H, W), jnp.float32)
    attention = jax.random.normal(ka, (B, ATT), jnp.float32)
    params = make_params(kp, ATT, C)

    out = al_en_forward(x, attention, params)
    out = jax.block_until_ready(out)

    ref = reference_forward(x, attention, params)
    assert out.shape == (B, C, H, W)
    assert jnp.allclose(out, ref, atol=1e-5, rtol=1e-5)

    print("KERNEL_OK")
</pallas_src>

<mosaic_0001>
module attributes {stable_mosaic.version = 11 : i64} {
  func.func @al_ch_kernel(%arg0: i32, %arg1: memref<1x64x256xf32, #tpu.memory_space<vmem>>, %arg2: memref<1x32x1xf32, #tpu.memory_space<vmem>>, %arg3: memref<128x32xf32, #tpu.memory_space<vmem>>, %arg4: memref<128x64xf32, #tpu.memory_space<vmem>>, %arg5: memref<128x1xf32, #tpu.memory_space<vmem>>, %arg6: memref<64x128xf32, #tpu.memory_space<vmem>>, %arg7: memref<64x1xf32, #tpu.memory_space<vmem>>, %arg8: memref<1x64x256xf32, #tpu.memory_space<vmem>>) attributes {dimension_semantics = [#tpu.dimension_semantics<parallel>], iteration_bounds = array<i64: 2>, scalar_prefetch = 0 : i64, scratch_operands = 0 : i64, tpu.core_type = #tpu.core_type<tc>, window_params = [{transform_indices = @transform_0, window_bounds = array<i64: 1, 64, 256>}, {transform_indices = @transform_1, window_bounds = array<i64: 1, 32, 1>}, {pipeline_mode = #tpu.pipeline_mode<synchronous>, transform_indices = @transform_2, window_bounds = array<i64: 128, 32>}, {pipeline_mode = #tpu.pipeline_mode<synchronous>, transform_indices = @transform_3, window_bounds = array<i64: 128, 64>}, {pipeline_mode = #tpu.pipeline_mode<synchronous>, transform_indices = @transform_4, window_bounds = array<i64: 128, 1>}, {pipeline_mode = #tpu.pipeline_mode<synchronous>, transform_indices = @transform_5, window_bounds = array<i64: 64, 128>}, {pipeline_mode = #tpu.pipeline_mode<synchronous>, transform_indices = @transform_6, window_bounds = array<i64: 64, 1>}, {transform_indices = @transform_7, window_bounds = array<i64: 1, 64, 256>}]} {
    %c0 = arith.constant 0 : index
    %c0_0 = arith.constant 0 : index
    %c0_1 = arith.constant 0 : index
    %0 = vector.load %arg1[%c0, %c0_0, %c0_1] : memref<1x64x256xf32, #tpu.memory_space<vmem>>, vector<1x64x256xf32>
    %1 = vector.shape_cast %0 : vector<1x64x256xf32> to vector<64x256xf32>
    %c0_2 = arith.constant 0 : index
    %c0_3 = arith.constant 0 : index
    %c0_4 = arith.constant 0 : index
    %2 = vector.load %arg2[%c0_2, %c0_3, %c0_4] : memref<1x32x1xf32, #tpu.memory_space<vmem>>, vector<1x32x1xf32>
    %3 = vector.shape_cast %2 : vector<1x32x1xf32> to vector<32x1xf32>
    %cst = arith.constant dense<0.000000e+00> : vector<64xf32>
    %4 = vector.multi_reduction <add>, %1, %cst [1] : vector<64x256xf32> to vector<64xf32>
    %5 = vector.shape_cast %4 : vector<64xf32> to vector<64x1xf32>
    %cst_5 = arith.constant 2.560000e+02 : f32
    %6 = vector.broadcast %cst_5 : f32 to vector<64x1xf32>
    %7 = arith.divf %5, %6 : vector<64x1xf32>
    %c0_6 = arith.constant 0 : index
    %c0_7 = arith.constant 0 : index
    %8 = vector.load %arg3[%c0_6, %c0_7] : memref<128x32xf32, #tpu.memory_space<vmem>>, vector<128x32xf32>
    %cst_8 = arith.constant dense<0.000000e+00> : vector<128x1xf32>
    %9 = tpu.matmul %8, %3, %cst_8 {dimension_numbers = #tpu.dot_dimension_numbers<[1], [0], [0], [1], [0, 0, 1, 1], [], []>} : vector<128x32xf32>, vector<32x1xf32>, vector<128x1xf32> -> vector<128x1xf32>
    %c0_9 = arith.constant 0 : index
    %c0_10 = arith.constant 0 : index
    %10 = vector.load %arg4[%c0_9, %c0_10] : memref<128x64xf32, #tpu.memory_space<vmem>>, vector<128x64xf32>
    %cst_11 = arith.constant dense<0.000000e+00> : vector<128x1xf32>
    %11 = tpu.matmul %10, %7, %cst_11 {dimension_numbers = #tpu.dot_dimension_numbers<[1], [0], [0], [1], [0, 0, 1, 1], [], []>} : vector<128x64xf32>, vector<64x1xf32>, vector<128x1xf32> -> vector<128x1xf32>
    %12 = arith.addf %9, %11 : vector<128x1xf32>
    %c0_12 = arith.constant 0 : index
    %c0_13 = arith.constant 0 : index
    %13 = vector.load %arg5[%c0_12, %c0_13] : memref<128x1xf32, #tpu.memory_space<vmem>>, vector<128x1xf32>
    %14 = arith.addf %12, %13 : vector<128x1xf32>
    %cst_14 = arith.constant 0.000000e+00 : f32
    %15 = vector.broadcast %cst_14 : f32 to vector<128x1xf32>
    %16 = arith.maximumf %14, %15 : vector<128x1xf32>
    %c0_15 = arith.constant 0 : index
    %c0_16 = arith.constant 0 : index
    %17 = vector.load %arg6[%c0_15, %c0_16] : memref<64x128xf32, #tpu.memory_space<vmem>>, vector<64x128xf32>
    %cst_17 = arith.constant dense<0.000000e+00> : vector<64x1xf32>
    %18 = tpu.matmul %17, %16, %cst_17 {dimension_numbers = #tpu.dot_dimension_numbers<[1], [0], [0], [1], [0, 0, 1, 1], [], []>} : vector<64x128xf32>, vector<128x1xf32>, vector<64x1xf32> -> vector<64x1xf32>
    %c0_18 = arith.constant 0 : index
    %c0_19 = arith.constant 0 : index
    %19 = vector.load %arg7[%c0_18, %c0_19] : memref<64x1xf32, #tpu.memory_space<vmem>>, vector<64x1xf32>
    %20 = arith.addf %18, %19 : vector<64x1xf32>
    %21 = arith.negf %20 : vector<64x1xf32>
    %22 = math.exp %21 : vector<64x1xf32>
    %cst_20 = arith.constant 1.000000e+00 : f32
    %23 = vector.broadcast %cst_20 : f32 to vector<64x1xf32>
    %24 = arith.addf %23, %22 : vector<64x1xf32>
    %25 = arith.divf %23, %24 : vector<64x1xf32>
    %26 = vector.broadcast %25 : vector<64x1xf32> to vector<64x256xf32>
    %27 = arith.mulf %1, %26 : vector<64x256xf32>
    %c0_21 = arith.constant 0 : index
    %c0_22 = arith.constant 0 : index
    %c0_23 = arith.constant 0 : index
    %28 = vector.load %arg8[%c0_21, %c0_22, %c0_23] : memref<1x64x256xf32, #tpu.memory_space<vmem>>, vector<1x64x256xf32>
    %29 = vector.shape_cast %28 : vector<1x64x256xf32> to vector<64x256xf32>
    %30 = vector.shape_cast %27 : vector<64x256xf32> to vector<1x64x256xf32>
    tpu.vector_store %arg8[%c0_21, %c0_22, %c0_23], %30 {strides = array<i32>} : memref<1x64x256xf32, #tpu.memory_space<vmem>>, vector<1x64x256xf32>,
    return
  }
  func.func @transform_0(%arg0: i32) -> (i32, i32, i32) {
    %c0_i32 = arith.constant 0 : i32
    %c0_i32_0 = arith.constant 0 : i32
    %c0_i32_1 = arith.constant 0 : i32
    return %arg0, %c0_i32, %c0_i32_0 : i32, i32, i32
  }
  func.func @transform_1(%arg0: i32) -> (i32, i32, i32) {
    %c0_i32 = arith.constant 0 : i32
    %c0_i32_0 = arith.constant 0 : i32
    %c0_i32_1 = arith.constant 0 : i32
    return %arg0, %c0_i32, %c0_i32_0 : i32, i32, i32
  }
  func.func @transform_2(%arg0: i32) -> (i32, i32) {
    %c0_i32 = arith.constant 0 : i32
    %c0_i32_0 = arith.constant 0 : i32
    %c0_i32_1 = arith.constant 0 : i32
    return %c0_i32, %c0_i32_0 : i32, i32
  }
  func.func @transform_3(%arg0: i32) -> (i32, i32) {
    %c0_i32 = arith.constant 0 : i32
    %c0_i32_0 = arith.constant 0 : i32
    %c0_i32_1 = arith.constant 0 : i32
    return %c0_i32, %c0_i32_0 : i32, i32
  }
  func.func @transform_4(%arg0: i32) -> (i32, i32) {
    %c0_i32 = arith.constant 0 : i32
    %c0_i32_0 = arith.constant 0 : i32
    %c0_i32_1 = arith.constant 0 : i32
    return %c0_i32, %c0_i32_0 : i32, i32
  }
  func.func @transform_5(%arg0: i32) -> (i32, i32) {
    %c0_i32 = arith.constant 0 : i32
    %c0_i32_0 = arith.constant 0 : i32
    %c0_i32_1 = arith.constant 0 : i32
    return %c0_i32, %c0_i32_0 : i32, i32
  }
  func.func @transform_6(%arg0: i32) -> (i32, i32) {
    %c0_i32 = arith.constant 0 : i32
    %c0_i32_0 = arith.constant 0 : i32
    %c0_i32_1 = arith.constant 0 : i32
    return %c0_i32, %c0_i32_0 : i32, i32
  }
  func.func @transform_7(%arg0: i32) -> (i32, i32, i32) {
    %c0_i32 = arith.constant 0 : i32
    %c0_i32_0 = arith.constant 0 : i32
    %c0_i32_1 = arith.constant 0 : i32
    return %arg0, %c0_i32, %c0_i32_0 : i32, i32, i32
  }
}

</mosaic_0001>

<llo_original>
// kernel: tpu_custom_call.1
$region0: #{tpu_custom_call.1}
  #allocation0 [shape = 'u32[]', space=smem, size = 0x4, offset = 0x4, fixed_abs, tag = 'smem constant byte address 0x4 - core index']
  #allocation1 [shape = 'u32[144,128]{1,0:T(1,128)}', space=vmem, size = 0x12000, scoped, tag = 'internal scratch']
  %s0 = inlined_call_operand.vmem [shape: f32[2,64,256], index: 0, kind: input, shape index: {}]
  %s1 = inlined_call_operand.vmem [shape: f32[2,32,1], index: 1, kind: input, shape index: {}]
  %s2 = inlined_call_operand.vmem [shape: f32[128,32], index: 2, kind: input, shape index: {}]
  %s3 = inlined_call_operand.vmem [shape: f32[128,64], index: 3, kind: input, shape index: {}]
  %s4 = inlined_call_operand.vmem [shape: f32[128,1], index: 4, kind: input, shape index: {}]
  %s5 = inlined_call_operand.vmem [shape: f32[64,128], index: 5, kind: input, shape index: {}]
  %s6 = inlined_call_operand.vmem [shape: f32[64,1], index: 6, kind: input, shape index: {}]
  %s7 = inlined_call_operand.hbm [shape: f32[2,64,256], index: 7, kind: output, shape index: {}]
  %s8 = sld [smem:[#allocation0]]
  $region61: #{tpu_custom_call.1} parent=0
    _
  %s10 = ssub.s32 1, %s8
  %s11 = scalar_select 0, %s10, %s8
  $region1: #{tpu_custom_call.1} parent=0
    #allocation2 [shape = 'u8[131072]{0}', space=vmem, size = 0x20000, scoped, tag = 'output window, operand 0']
    #allocation3 [shape = 's32[2]{0}', space=sflag, size = 0x8, scoped, tag = 'scoped memory for tpu_custom_call.1']
    %12 = vsyncpa [#allocation3], 0
    %s13 = scalar_lea.sflag [#allocation3], 1
    %14 = vsyncpa %s13, 0
    loop: start=0, step=1, limit=4
    $region2: #{tpu_custom_call.1} parent=1 // loop_pre_header
      _
    $region3: #{tpu_custom_call.1} parent=1 // loop_header
      %s16 = sphi 0, %s20
      %p17 = scmp.ge.s32.totalorder %s16, 4
      %s26 = sphi 0, %s28
      %s29 = sphi 0, %s26
      %s30 = sphi 0, %s29
      %s46 = sphi 0, %s30
      %s52 = sphi 0, %s54
      %s55 = sphi 0, %s52
      %s56 = sphi 0, %s55
      %s72 = sphi 0, %s56
      %s76 = sphi 0, %s76
      %s78 = sphi 0, %s76
      %s79 = sphi 0, %s78
      %s93 = sphi 0, %s79
      %s97 = sphi 0, %s97
      %s99 = sphi 0, %s97
      %s100 = sphi 0, %s99
      %s114 = sphi 0, %s100
      %s118 = sphi 0, %s118
      %s120 = sphi 0, %s118
      %s121 = sphi 0, %s120
      %s135 = sphi 0, %s121
      %s139 = sphi 0, %s139
      %s141 = sphi 0, %s139
      %s142 = sphi 0, %s141
      %s156 = sphi 0, %s142
      %s160 = sphi 0, %s160
      %s162 = sphi 0, %s160
      %s163 = sphi 0, %s162
      %s177 = sphi 0, %s163
      %s183 = sphi 0, %s185
      %s186 = sphi 0, %s183
      %s187 = sphi 0, %s186
      %s203 = sphi 0, %s187
    $region4: #{tpu_custom_call.1} parent=1 // loop_header_branch
      %19 = sbr.rel (%p17) target = $region8
    $region5: #{tpu_custom_call.1} parent=1 // loop_body
      %s21 = ssub.s32 %s16, 1
      %s22 = ssub.s32 %s16, 2
      %s23 = sadd.s32 %s16, 1
      %s24 = ssub.s32 %s16, %s23
      %p25 = scmp.eq.s32.totalorder %s24, 0
      %s27 = sadd.s32 %s26, 1
      %s28 = scalar_select %p25, %s26, %s27
      %p31 = pneg %p25
      %p32 = scmp.eq.s32.totalorder %s16, 1
      %p33 = por %p31, %p32
      %p34 = scmp.ne.s32.totalorder %s26, %s29
      %p35 = scmp.eq.s32.totalorder %s16, 0
      %p36 = por %p34, %p35
      %p37 = scmp.ne.s32.totalorder %s26, %s29
      %p38 = scmp.eq.s32.totalorder %s21, 1
      %p39 = por %p37, %p38
      %p40 = scmp.ne.s32.totalorder %s29, %s30
      %p41 = scmp.eq.s32.totalorder %s21, 0
      %p42 = por %p40, %p41
      %p43 = scmp.ne.s32.totalorder %s29, %s30
      %p44 = scmp.eq.s32.totalorder %s22, 1
      %p45 = por %p43, %p44
      %p47 = scmp.ne.s32.totalorder %s30, %s46
      %p48 = scmp.eq.s32.totalorder %s22, 0
      %p49 = por %p47, %p48
      %s50 = ssub.s32 %s16, %s23
      %p51 = scmp.eq.s32.totalorder %s50, 0
      %s53 = sadd.s32 %s52, 1
      %s54 = scalar_select %p51, %s52, %s53
      %p57 = pneg %p51
      %p58 = scmp.eq.s32.totalorder %s16, 1
      %p59 = por %p57, %p58
      %p60 = scmp.ne.s32.totalorder %s52, %s55
      %p61 = scmp.eq.s32.totalorder %s16, 0
      %p62 = por %p60, %p61
      %p63 = scmp.ne.s32.totalorder %s52, %s55
      %p64 = scmp.eq.s32.totalorder %s21, 1
      %p65 = por %p63, %p64
      %p66 = scmp.ne.s32.totalorder %s55, %s56
      %p67 = scmp.eq.s32.totalorder %s21, 0
      %p68 = por %p66, %p67
      %p69 = scmp.ne.s32.totalorder %s55, %s56
      %p70 = scmp.eq.s32.totalorder %s22, 1
      %p71 = por %p69, %p70
      %p73 = scmp.ne.s32.totalorder %s56, %s72
      %p74 = scmp.eq.s32.totalorder %s22, 0
      %p75 = por %p73, %p74
      %s77 = sadd.s32 %s76, 1
      %p80 = scmp.eq.s32.totalorder %s16, 1
      %p81 = scmp.ne.s32.totalorder %s76, %s78
      %p82 = scmp.eq.s32.totalorder %s16, 0
      %p83 = por %p81, %p82
      %p84 = scmp.ne.s32.totalorder %s76, %s78
      %p85 = scmp.eq.s32.totalorder %s21, 1
      %p86 = por %p84, %p85
      %p87 = scmp.ne.s32.totalorder %s78, %s79
      %p88 = scmp.eq.s32.totalorder %s21, 0
      %p89 = por %p87, %p88
      %p90 = scmp.ne.s32.totalorder %s78, %s79
      %p91 = scmp.eq.s32.totalorder %s22, 1
      %p92 = por %p90, %p91
      %p94 = scmp.ne.s32.totalorder %s79, %s93
      %p95 = scmp.eq.s32.totalorder %s22, 0
      %p96 = por %p94, %p95
      %s98 = sadd.s32 %s97, 1
      %p101 = scmp.eq.s32.totalorder %s16, 1
      %p102 = scmp.ne.s32.totalorder %s97, %s99
      %p103 = scmp.eq.s32.totalorder %s16, 0
      %p104 = por %p102, %p103
      %p105 = scmp.ne.s32.totalorder %s97, %s99
      %p106 = scmp.eq.s32.totalorder %s21, 1
      %p107 = por %p105, %p106
      %p108 = scmp.ne.s32.totalorder %s99, %s100
      %p109 = scmp.eq.s32.totalorder %s21, 0
      %p110 = por %p108, %p109
      %p111 = scmp.ne.s32.totalorder %s99, %s100
      %p112 = scmp.eq.s32.totalorder %s22, 1
      %p113 = por %p111, %p112
      %p115 = scmp.ne.s32.totalorder %s100, %s114
      %p116 = scmp.eq.s32.totalorder %s22, 0
      %p117 = por %p115, %p116
      %s119 = sadd.s32 %s118, 1
      %p122 = scmp.eq.s32.totalorder %s16, 1
      %p123 = scmp.ne.s32.totalorder %s118, %s120
      %p124 = scmp.eq.s32.totalorder %s16, 0
      %p125 = por %p123, %p124
      %p126 = scmp.ne.s32.totalorder %s118, %s120
      %p127 = scmp.eq.s32.totalorder %s21, 1
      %p128 = por %p126, %p127
      %p129 = scmp.ne.s32.totalorder %s120, %s121
      %p130 = scmp.eq.s32.totalorder %s21, 0
      %p131 = por %p129, %p130
      %p132 = scmp.ne.s32.totalorder %s120, %s121
      %p133 = scmp.eq.s32.totalorder %s22, 1
      %p134 = por %p132, %p133
      %p136 = scmp.ne.s32.totalorder %s121, %s135
      %p137 = scmp.eq.s32.totalorder %s22, 0
      %p138 = por %p136, %p137
      %s140 = sadd.s32 %s139, 1
      %p143 = scmp.eq.s32.totalorder %s16, 1
      %p144 = scmp.ne.s32.totalorder %s139, %s141
      %p145 = scmp.eq.s32.totalorder %s16, 0
      %p146 = por %p144, %p145
      %p147 = scmp.ne.s32.totalorder %s139, %s141
      %p148 = scmp.eq.s32.totalorder %s21, 1
      %p149 = por %p147, %p148
      %p150 = scmp.ne.s32.totalorder %s141, %s142
      %p151 = scmp.eq.s32.totalorder %s21, 0
      %p152 = por %p150, %p151
      %p153 = scmp.ne.s32.totalorder %s141, %s142
      %p154 = scmp.eq.s32.totalorder %s22, 1
      %p155 = por %p153, %p154
      %p157 = scmp.ne.s32.totalorder %s142, %s156
      %p158 = scmp.eq.s32.totalorder %s22, 0
      %p159 = por %p157, %p158
      %s161 = sadd.s32 %s160, 1
      %p164 = scmp.eq.s32.totalorder %s16, 1
      %p165 = scmp.ne.s32.totalorder %s160, %s162
      %p166 = scmp.eq.s32.totalorder %s16, 0
      %p167 = por %p165, %p166
      %p168 = scmp.ne.s32.totalorder %s160, %s162
      %p169 = scmp.eq.s32.totalorder %s21, 1
      %p170 = por %p168, %p169
      %p171 = scmp.ne.s32.totalorder %s162, %s163
      %p172 = scmp.eq.s32.totalorder %s21, 0
      %p173 = por %p171, %p172
      %p174 = scmp.ne.s32.totalorder %s162, %s163
      %p175 = scmp.eq.s32.totalorder %s22, 1
      %p176 = por %p174, %p175
      %p178 = scmp.ne.s32.totalorder %s163, %s177
      %p179 = scmp.eq.s32.totalorder %s22, 0
      %p180 = por %p178, %p179
      %s181 = ssub.s32 %s16, %s23
      %p182 = scmp.eq.s32.totalorder %s181, 0
      %s184 = sadd.s32 %s183, 1
      %s185 = scalar_select %p182, %s183, %s184
      %p188 = pneg %p182
      %p189 = scmp.eq.s32.totalorder %s16, 1
      %p190 = por %p188, %p189
      %p191 = scmp.ne.s32.totalorder %s183, %s186
      %p192 = scmp.eq.s32.totalorder %s16, 0
      %p193 = por %p191, %p192
      %p194 = scmp.ne.s32.totalorder %s183, %s186
      %p195 = scmp.eq.s32.totalorder %s21, 1
      %p196 = por %p194, %p195
      %p197 = scmp.ne.s32.totalorder %s186, %s187
      %p198 = scmp.eq.s32.totalorder %s21, 0
      %p199 = por %p197, %p198
      %p200 = scmp.ne.s32.totalorder %s186, %s187
      %p201 = scmp.eq.s32.totalorder %s22, 1
      %p202 = por %p200, %p201
      %p204 = scmp.ne.s32.totalorder %s187, %s203
      %p205 = scmp.eq.s32.totalorder %s22, 0
      %p206 = por %p204, %p205
      %p207 = scmp.le.s32.totalorder 1, %s16
      %p208 = scmp.lt.s32.totalorder %s16, 3
      %p209 = pnand %p207, %p208
      %p210 = pneg %p209
      // Predicated region
      $region9: #{tpu_custom_call.1} parent=5 // pred_check
        _
      $region10: #{tpu_custom_call.1} parent=5 // pred_check_branch
        %212 = sbr.rel (%p209) target = $region12
      $region11: #{tpu_custom_call.1} parent=5 // pred_region
        %s213 = ssub.s32 %s16, 1
        // Predicated region
        $region13: #{tpu_custom_call.1} parent=11 // pred_check
          %p214 = pneg %p89
        $region14: #{tpu_custom_call.1} parent=11 // pred_check_branch
          %216 = sbr.rel (%p214) target = $region16
        $region15: #{tpu_custom_call.1} parent=11 // pred_region
          _
        $region16: #{tpu_custom_call.1} parent=11 // pred_fallthru
          _
        // Predicated region
        $region17: #{tpu_custom_call.1} parent=11 // pred_check
          %p217 = pneg %p110
        $region18: #{tpu_custom_call.1} parent=11 // pred_check_branch
          %219 = sbr.rel (%p217) target = $region20
        $region19: #{tpu_custom_call.1} parent=11 // pred_region
          _
        $region20: #{tpu_custom_call.1} parent=11 // pred_fallthru
          _
        // Predicated region
        $region21: #{tpu_custom_call.1} parent=11 // pred_check
          %p220 = pneg %p131
        $region22: #{tpu_custom_call.1} parent=11 // pred_check_branch
          %222 = sbr.rel (%p220) target = $region24
        $region23: #{tpu_custom_call.1} parent=11 // pred_region
          _
        $region24: #{tpu_custom_call.1} parent=11 // pred_fallthru
          _
        // Predicated region
        $region25: #{tpu_custom_call.1} parent=11 // pred_check
          %p223 = pneg %p152
        $region26: #{tpu_custom_call.1} parent=11 // pred_check_branch
          %225 = sbr.rel (%p223) target = $region28
        $region27: #{tpu_custom_call.1} parent=11 // pred_region
          _
        $region28: #{tpu_custom_call.1} parent=11 // pred_fallthru
          _
        // Predicated region
        $region29: #{tpu_custom_call.1} parent=11 // pred_check
          %p226 = pneg %p173
        $region30: #{tpu_custom_call.1} parent=11 // pred_check_branch
          %228 = sbr.rel (%p226) target = $region32
        $region31: #{tpu_custom_call.1} parent=11 // pred_region
          _
        $region32: #{tpu_custom_call.1} parent=11 // pred_fallthru
          _
      $region12: #{tpu_custom_call.1} parent=5 // pred_fallthru
        _
      %p229 = scmp.lt.s32.totalorder %s16, 2
      // Predicated region
      $region33: #{tpu_custom_call.1} parent=5 // pred_check
        %p230 = pneg %p229
      $region34: #{tpu_custom_call.1} parent=5 // pred_check_branch
        %232 = sbr.rel (%p230) target = $region36
      $region35: #{tpu_custom_call.1} parent=5 // pred_region
        // Predicated region
        $region37: #{tpu_custom_call.1} parent=35 // pred_check
          %p233 = pneg %p36
        $region38: #{tpu_custom_call.1} parent=35 // pred_check_branch
          %235 = sbr.rel (%p233) target = $region40
        $region39: #{tpu_custom_call.1} parent=35 // pred_region
          %p236 = scmp.lt.s32.totalorder %s16, 1
          %s237 = scalar_select %p236, %s16, 1
          %s238 = smul.addr %s237, 16
          %s239 = smul.addr %s238, 8
          %s240 = scalar_lea.vmem %s0, %s239
        $region40: #{tpu_custom_call.1} parent=35 // pred_fallthru
          _
        // Predicated region
        $region41: #{tpu_custom_call.1} parent=35 // pred_check
          %p241 = pneg %p62
        $region42: #{tpu_custom_call.1} parent=35 // pred_check_branch
          %243 = sbr.rel (%p241) target = $region44
        $region43: #{tpu_custom_call.1} parent=35 // pred_region
          %p244 = scmp.lt.s32.totalorder %s16, 1
          %s245 = scalar_select %p244, %s16, 1
          %s246 = smul.addr %s245, 4
          %s247 = smul.addr %s246, 8
          %s248 = scalar_lea.vmem %s1, %s247
        $region44: #{tpu_custom_call.1} parent=35 // pred_fallthru
          _
      $region36: #{tpu_custom_call.1} parent=5 // pred_fallthru
        _
      %p249 = scmp.le.s32.totalorder 1, %s16
      %p250 = scmp.lt.s32.totalorder %s16, 3
      %p251 = pnand %p249, %p250
      %p252 = pneg %p251
      // Predicated region
      $region45: #{tpu_custom_call.1} parent=5 // pred_check
        _
      $region46: #{tpu_custom_call.1} parent=5 // pred_check_branch
        %254 = sbr.rel (%p251) target = $region48
      $region47: #{tpu_custom_call.1} parent=5 // pred_region
        %s255 = ssub.s32 %s16, 1
        %p256 = scmp.lt.s32.totalorder %s21, 1
        %s257 = scalar_select %p256, %s21, 1
        %s258 = smul.addr %s257, 16
        %s259 = smul.addr %s258, 8
        %s260 = scalar_lea.vmem %s0, %s259
        %p261 = pneg %p42
        %p262 = pneg %p39
        %p263 = scmp.lt.s32.totalorder %s21, 1
        %s264 = scalar_select %p263, %s21, 1
        %s265 = smul.addr %s264, 4
        %s266 = smul.addr %s265, 8
        %s267 = scalar_lea.vmem %s1, %s266
        %p268 = pneg %p68
        %p269 = pneg %p65
        %p270 = pneg %p89
        %p271 = pneg %p86
        %p272 = pneg %p110
        %p273 = pneg %p107
        %p274 = pneg %p131
        %p275 = pneg %p128
        %p276 = pneg %p152
        %p277 = pneg %p149
        %p278 = pneg %p173
        %p279 = pneg %p170
        %p280 = pneg %p199
        %p281 = pneg %p196
        %s282 = sand.u32 %s186, 1
        %s283 = scalar_lea.sflag [#allocation3], %s282
        %s284 = sand.u32 %s186, 1
        %s285 = smul.addr %s284, 128
        %s286 = scalar_lea.vmem [#allocation2], %s285
        %p287 = scmp.lt.s32.totalorder %s21, 1
        %s288 = scalar_select %p287, %s21, 1
        %s289 = smul.addr %s288, 16
        %s290 = smul.addr %s289, 8
        %s291 = scalar_lea.vmem %s0, %s290
        %p292 = scmp.lt.s32.totalorder %s21, 1
        %s293 = scalar_select %p292, %s21, 1
        %s294 = smul.addr %s293, 4
        %s295 = smul.addr %s294, 8
        %s296 = scalar_lea.vmem %s1, %s295
        %v297 = vld [vmem:[%s291] sm:$0xff]
        %v298 = vld [vmem:[%s291 + $0x8] sm:$0xff]
        %v299 = vld [vmem:[%s291 + $0x10] sm:$0xff]
        %v300 = vld [vmem:[%s291 + $0x18] sm:$0xff]
        %v301 = vld [vmem:[%s291 + $0x20] sm:$0xff]
        %v302 = vld [vmem:[%s291 + $0x28] sm:$0xff]
        %v303 = vld [vmem:[%s291 + $0x30] sm:$0xff]
        %v304 = vld [vmem:[%s291 + $0x38] sm:$0xff]
        %v305 = vld [vmem:[%s291 + $0x40] sm:$0xff]
        %v306 = vld [vmem:[%s291 + $0x48] sm:$0xff]
        %v307 = vld [vmem:[%s291 + $0x50] sm:$0xff]
        %v308 = vld [vmem:[%s291 + $0x58] sm:$0xff]
        %v309 = vld [vmem:[%s291 + $0x60] sm:$0xff]
        %v310 = vld [vmem:[%s291 + $0x68] sm:$0xff]
        %v311 = vld [vmem:[%s291 + $0x70] sm:$0xff]
        %v312 = vld [vmem:[%s291 + $0x78] sm:$0xff]
        %v313 = vld [vmem:[%s296] sm:$0xff]
        %v314 = vld [vmem:[%s296 + $0x8] sm:$0xff]
        %v315 = vld [vmem:[%s296 + $0x10] sm:$0xff]
        %v316 = vld [vmem:[%s296 + $0x18] sm:$0xff]
        %v317 = vadd.f32 %v297, %v298
        %318 = vadd.xlane.f32.xlu0 %v317
        %v319 = vpop.xlane.xlu0 %318
        %v320 = vadd.f32 %v299, %v300
        %321 = vadd.xlane.f32.xlu0 %v320
        %v322 = vpop.xlane.xlu0 %321
        %v323 = vadd.f32 %v301, %v302
        %324 = vadd.xlane.f32.xlu0 %v323
        %v325 = vpop.xlane.xlu0 %324
        %v326 = vadd.f32 %v303, %v304
        %327 = vadd.xlane.f32.xlu0 %v326
        %v328 = vpop.xlane.xlu0 %327
        %v329 = vadd.f32 %v305, %v306
        %330 = vadd.xlane.f32.xlu0 %v329
        %v331 = vpop.xlane.xlu0 %330
        %v332 = vadd.f32 %v307, %v308
        %333 = vadd.xlane.f32.xlu0 %v332
        %v334 = vpop.xlane.xlu0 %333
        %v335 = vadd.f32 %v309, %v310
        %336 = vadd.xlane.f32.xlu0 %v335
        %v337 = vpop.xlane.xlu0 %336
        %v338 = vadd.f32 %v311, %v312
        %339 = vadd.xlane.f32.xlu0 %v338
        %v340 = vpop.xlane.xlu0 %339
        %v341 = vrcp.pop 256.0
        %v342 = vmul.f32 %v319, %v341
        %v343 = vmul.f32 %v322, %v341
        %v344 = vmul.f32 %v325, %v341
        %v345 = vmul.f32 %v328, %v341
        %v346 = vmul.f32 %v331, %v341
        %v347 = vmul.f32 %v334, %v341
        %v348 = vmul.f32 %v337, %v341
        %v349 = vmul.f32 %v340, %v341
        %v350 = vld [vmem:[%s2] sm:$0xff]
        %v351 = vld [vmem:[%s2 + $0x8] sm:$0xff]
        %v352 = vld [vmem:[%s2 + $0x10] sm:$0xff]
        %v353 = vld [vmem:[%s2 + $0x18] sm:$0xff]
        %v354 = vld [vmem:[%s2 + $0x20] sm:$0xff]
        %v355 = vld [vmem:[%s2 + $0x28] sm:$0xff]
        %v356 = vld [vmem:[%s2 + $0x30] sm:$0xff]
        %v357 = vld [vmem:[%s2 + $0x38] sm:$0xff]
        %v358 = vld [vmem:[%s2 + $0x40] sm:$0xff]
        %v359 = vld [vmem:[%s2 + $0x48] sm:$0xff]
        %v360 = vld [vmem:[%s2 + $0x50] sm:$0xff]
        %v361 = vld [vmem:[%s2 + $0x58] sm:$0xff]
        %v362 = vld [vmem:[%s2 + $0x60] sm:$0xff]
        %v363 = vld [vmem:[%s2 + $0x68] sm:$0xff]
        %v364 = vld [vmem:[%s2 + $0x70] sm:$0xff]
        %v365 = vld [vmem:[%s2 + $0x78] sm:$0xff]
        %v366 = vld [vmem:[%s3] sm:$0xff]
        %v367 = vld [vmem:[%s3 + $0x8] sm:$0xff]
        %v368 = vld [vmem:[%s3 + $0x10] sm:$0xff]
        %v369 = vld [vmem:[%s3 + $0x18] sm:$0xff]
        %v370 = vld [vmem:[%s3 + $0x20] sm:$0xff]
        %v371 = vld [vmem:[%s3 + $0x28] sm:$0xff]
        %v372 = vld [vmem:[%s3 + $0x30] sm:$0xff]
        %v373 = vld [vmem:[%s3 + $0x38] sm:$0xff]
        %v374 = vld [vmem:[%s3 + $0x40] sm:$0xff]
        %v375 = vld [vmem:[%s3 + $0x48] sm:$0xff]
        %v376 = vld [vmem:[%s3 + $0x50] sm:$0xff]
        %v377 = vld [vmem:[%s3 + $0x58] sm:$0xff]
        %v378 = vld [vmem:[%s3 + $0x60] sm:$0xff]
        %v379 = vld [vmem:[%s3 + $0x68] sm:$0xff]
        %v380 = vld [vmem:[%s3 + $0x70] sm:$0xff]
        %v381 = vld [vmem:[%s3 + $0x78] sm:$0xff]
        %vm382 = vcmask 523264
        %v384 = vsel %vm382, %v366, 0
        %v387 = vsel %vm382, %v367, 0
        %v390 = vsel %vm382, %v368, 0
        %v393 = vsel %vm382, %v369, 0
        %v396 = vsel %vm382, %v370, 0
        %v399 = vsel %vm382, %v371, 0
        %v402 = vsel %vm382, %v372, 0
        %v405 = vsel %vm382, %v373, 0
        %v408 = vsel %vm382, %v374, 0
        %v411 = vsel %vm382, %v375, 0
        %v414 = vsel %vm382, %v376, 0
        %v417 = vsel %vm382, %v377, 0
        %v420 = vsel %vm382, %v378, 0
        %v423 = vsel %vm382, %v379, 0
        %v426 = vsel %vm382, %v380, 0
        %v429 = vsel %vm382, %v381, 0
        %431 = vmatprep.subr.mxu0 0.0
        %432 = vmatpush1.msra.mxu0 %v342
        %433 = vmatprep.subr.mxu0 0.0
        %434 = vmatpush1.msra.mxu0 %v343
        %435 = vmatprep.subr.mxu0 0.0
        %436 = vmatpush1.msra.mxu0 %v344
        %437 = vmatprep.subr.mxu0 0.0
        %438 = vmatpush1.msra.mxu0 %v345
        %439 = vmatprep.subr.mxu0 0.0
        %440 = vmatpush1.msra.mxu0 %v346
        %441 = vmatprep.subr.mxu0 0.0
        %442 = vmatpush1.msra.mxu0 %v347
        %443 = vmatprep.subr.mxu0 0.0
        %444 = vmatpush1.msra.mxu0 %v348
        %445 = vmatprep.subr.mxu0 0.0
        %446 = vmatpush1.msra.mxu0 %v349
        %447 = vmatprep.subr.mxu0 0.0
        %448 = vmatpush1.msra.mxu0 0.0
        %449 = vmatprep.subr.mxu0 0.0
        %450 = vmatpush1.msra.mxu0 0.0
        %451 = vmatprep.subr.mxu0 0.0
        %452 = vmatpush1.msra.mxu0 0.0
        %453 = vmatprep.subr.mxu0 0.0
        %454 = vmatpush1.msra.mxu0 0.0
        %455 = vmatprep.subr.mxu0 0.0
        %456 = vmatpush1.msra.mxu0 0.0
        %457 = vmatprep.subr.mxu0 0.0
        %458 = vmatpush1.msra.mxu0 0.0
        %459 = vmatprep.subr.mxu0 0.0
        %460 = vmatpush1.msra.mxu0 0.0
        %461 = vmatprep.subr.mxu0 0.0
        %462 = vmatpush1.msra.mxu0 0.0
        %463 = vmatprep.subr.mxu0 0.0
        %464 = vmatpush1.msra.mxu0 0.0
        %465 = vmatprep.subr.mxu0 0.0
        %466 = vmatpush1.msra.mxu0 0.0
        %467 = vmatprep.subr.mxu0 0.0
        %468 = vmatpush1.msra.mxu0 0.0
        %469 = vmatprep.subr.mxu0 0.0
        %470 = vmatpush1.msra.mxu0 0.0
        %471 = vmatprep.subr.mxu0 0.0
        %472 = vmatpush1.msra.mxu0 0.0
        %473 = vmatprep.subr.mxu0 0.0
        %474 = vmatpush1.msra.mxu0 0.0
        %475 = vmatprep.subr.mxu0 0.0
        %476 = vmatpush1.msra.mxu0 0.0
        %477 = vmatprep.subr.mxu0 0.0
        %478 = vmatpush1.msra.mxu0 0.0
        %479 = vmatprep.subr.mxu0 0.0
        %480 = vmatpush1.msra.mxu0 0.0
        %481 = vmatprep.subr.mxu0 0.0
        %482 = vmatpush1.msra.mxu0 0.0
        %483 = vmatprep.subr.mxu0 0.0
        %484 = vmatpush1.msra.mxu0 0.0
        %485 = vmatprep.subr.mxu0 0.0
        %486 = vmatpush1.msra.mxu0 0.0
        %487 = vmatprep.subr.mxu0 0.0
        %488 = vmatpush1.msra.mxu0 0.0
        %489 = vmatprep.subr.mxu0 0.0
        %490 = vmatpush1.msra.mxu0 0.0
        %491 = vmatprep.subr.mxu0 0.0
        %492 = vmatpush1.msra.mxu0 0.0
        %493 = vmatprep.subr.mxu0 0.0
        %494 = vmatpush1.msra.mxu0 0.0
        %495 = vmatprep.mubr.f32.mxu0 0.0
        %496 = vmatmul.mubr.f32.gmra.mrb[0].mxu0 %v384
        %v497 = vpop.f32.mrb[0].mxu0
        %v498 = vadd.f32 0.0, %v497
        %v499 = vpop.f32.mrb[0].mxu0
        %500 = vmatprep.mubr.f32.mxu0 0.0
        %501 = vmatmul.mubr.f32.gmra.mrb[0].mxu0 %v387
        %v502 = vpop.f32.mrb[0].mxu0
        %v503 = vadd.f32 0.0, %v502
        %v504 = vpop.f32.mrb[0].mxu0
        %505 = vmatprep.mubr.f32.mxu0 0.0
        %506 = vmatmul.mubr.f32.gmra.mrb[0].mxu0 %v390
        %v507 = vpop.f32.mrb[0].mxu0
        %v508 = vadd.f32 0.0, %v507
        %v509 = vpop.f32.mrb[0].mxu0
        %510 = vmatprep.mubr.f32.mxu0 0.0
        %511 = vmatmul.mubr.f32.gmra.mrb[0].mxu0 %v393
        %v512 = vpop.f32.mrb[0].mxu0
        %v513 = vadd.f32 0.0, %v512
        %v514 = vpop.f32.mrb[0].mxu0
        %515 = vmatprep.mubr.f32.mxu0 0.0
        %516 = vmatmul.mubr.f32.gmra.mrb[0].mxu0 %v396
        %v517 = vpop.f32.mrb[0].mxu0
        %v518 = vadd.f32 0.0, %v517
        %v519 = vpop.f32.mrb[0].mxu0
        %520 = vmatprep.mubr.f32.mxu0 0.0
        %521 = vmatmul.mubr.f32.gmra.mrb[0].mxu0 %v399
        %v522 = vpop.f32.mrb[0].mxu0
        %v523 = vadd.f32 0.0, %v522
        %v524 = vpop.f32.mrb[0].mxu0
        %525 = vmatprep.mubr.f32.mxu0 0.0
        %526 = vmatmul.mubr.f32.gmra.mrb[0].mxu0 %v402
        %v527 = vpop.f32.mrb[0].mxu0
        %v528 = vadd.f32 0.0, %v527
        %v529 = vpop.f32.mrb[0].mxu0
        %530 = vmatprep.mubr.f32.mxu0 0.0
        %531 = vmatmul.mubr.f32.gmra.mrb[0].mxu0 %v405
        %v532 = vpop.f32.mrb[0].mxu0
        %v533 = vadd.f32 0.0, %v532
        %v534 = vpop.f32.mrb[0].mxu0
        %535 = vmatprep.mubr.f32.mxu0 0.0
        %536 = vmatmul.mubr.f32.gmra.mrb[0].mxu0 %v408
        %v537 = vpop.f32.mrb[0].mxu0
        %v538 = vadd.f32 0.0, %v537
        %v539 = vpop.f32.mrb[0].mxu0
        %540 = vmatprep.mubr.f32.mxu0 0.0
        %541 = vmatmul.mubr.f32.gmra.mrb[0].mxu0 %v411
        %v542 = vpop.f32.mrb[0].mxu0
        %v543 = vadd.f32 0.0, %v542
        %v544 = vpop.f32.mrb[0].mxu0
        %545 = vmatprep.mubr.f32.mxu0 0.0
        %546 = vmatmul.mubr.f32.gmra.mrb[0].mxu0 %v414
        %v547 = vpop.f32.mrb[0].mxu0
        %v548 = vadd.f32 0.0, %v547
        %v549 = vpop.f32.mrb[0].mxu0
        %550 = vmatprep.mubr.f32.mxu0 0.0
        %551 = vmatmul.mubr.f32.gmra.mrb[0].mxu0 %v417
        %v552 = vpop.f32.mrb[0].mxu0
        %v553 = vadd.f32 0.0, %v552
        %v554 = vpop.f32.mrb[0].mxu0
        %555 = vmatprep.mubr.f32.mxu0 0.0
        %556 = vmatmul.mubr.f32.gmra.mrb[0].mxu0 %v420
        %v557 = vpop.f32.mrb[0].mxu0
        %v558 = vadd.f32 0.0, %v557
        %v559 = vpop.f32.mrb[0].mxu0
        %560 = vmatprep.mubr.f32.mxu0 0.0
        %561 = vmatmul.mubr.f32.gmra.mrb[0].mxu0 %v423
        %v562 = vpop.f32.mrb[0].mxu0
        %v563 = vadd.f32 0.0, %v562
        %v564 = vpop.f32.mrb[0].mxu0
        %565 = vmatprep.mubr.f32.mxu0 0.0
        %566 = vmatmul.mubr.f32.gmra.mrb[0].mxu0 %v426
        %v567 = vpop.f32.mrb[0].mxu0
        %v568 = vadd.f32 0.0, %v567
        %v569 = vpop.f32.mrb[0].mxu0
        %570 = vmatprep.mubr.f32.mxu0 0.0
        %571 = vmatmul.mubr.f32.gmra.mrb[0].mxu0 %v429
        %v572 = vpop.f32.mrb[0].mxu0
        %v573 = vadd.f32 0.0, %v572
        %v574 = vpop.f32.mrb[0].mxu0
        %575 = vdwg.mxu0
        %vm576 = vcmask 261120
        %v578 = vsel %vm576, %v350, 0
        %v581 = vsel %vm576, %v351, 0
        %v584 = vsel %vm576, %v352, 0
        %v587 = vsel %vm576, %v353, 0
        %v590 = vsel %vm576, %v354, 0
        %v593 = vsel %vm576, %v355, 0
        %v596 = vsel %vm576, %v356, 0
        %v599 = vsel %vm576, %v357, 0
        %v602 = vsel %vm576, %v358, 0
        %v605 = vsel %vm576, %v359, 0
        %v608 = vsel %vm576, %v360, 0
        %v611 = vsel %vm576, %v361, 0
        %v614 = vsel %vm576, %v362, 0
        %v617 = vsel %vm576, %v363, 0
        %v620 = vsel %vm576, %v364, 0
        %v623 = vsel %vm576, %v365, 0
        %625 = vmatprep.subr.mxu0 0.0
        %626 = vmatpush1.msra.mxu0 %v313
        %627 = vmatprep.subr.mxu0 0.0
        %628 = vmatpush1.msra.mxu0 %v314
        %629 = vmatprep.subr.mxu0 0.0
        %630 = vmatpush1.msra.mxu0 %v315
        %631 = vmatprep.subr.mxu0 0.0
        %632 = vmatpush1.msra.mxu0 %v316
        %633 = vmatprep.subr.mxu0 0.0
        %634 = vmatpush1.msra.mxu0 0.0
        %635 = vmatprep.subr.mxu0 0.0
        %636 = vmatpush1.msra.mxu0 0.0
        %637 = vmatprep.subr.mxu0 0.0
        %638 = vmatpush1.msra.mxu0 0.0
        %639 = vmatprep.subr.mxu0 0.0
        %640 = vmatpush1.msra.mxu0 0.0
        %641 = vmatprep.subr.mxu0 0.0
        %642 = vmatpush1.msra.mxu0 0.0
        %643 = vmatprep.subr.mxu0 0.0
        %644 = vmatpush1.msra.mxu0 0.0
        %645 = vmatprep.subr.mxu0 0.0
        %646 = vmatpush1.msra.mxu0 0.0
        %647 = vmatprep.subr.mxu0 0.0
        %648 = vmatpush1.msra.mxu0 0.0
        %649 = vmatprep.subr.mxu0 0.0
        %650 = vmatpush1.msra.mxu0 0.0
        %651 = vmatprep.subr.mxu0 0.0
        %652 = vmatpush1.msra.mxu0 0.0
        %653 = vmatprep.subr.mxu0 0.0
        %654 = vmatpush1.msra.mxu0 0.0
        %655 = vmatprep.subr.mxu0 0.0
        %656 = vmatpush1.msra.mxu0 0.0
        %657 = vmatprep.subr.mxu0 0.0
        %658 = vmatpush1.msra.mxu0 0.0
        %659 = vmatprep.subr.mxu0 0.0
        %660 = vmatpush1.msra.mxu0 0.0
        %661 = vmatprep.subr.mxu0 0.0
        %662 = vmatpush1.msra.mxu0 0.0
        %663 = vmatprep.subr.mxu0 0.0
        %664 = vmatpush1.msra.mxu0 0.0
        %665 = vmatprep.subr.mxu0 0.0
        %666 = vmatpush1.msra.mxu0 0.0
        %667 = vmatprep.subr.mxu0 0.0
        %668 = vmatpush1.msra.mxu0 0.0
        %669 = vmatprep.subr.mxu0 0.0
        %670 = vmatpush1.msra.mxu0 0.0
        %671 = vmatprep.subr.mxu0 0.0
        %672 = vmatpush1.msra.mxu0 0.0
        %673 = vmatprep.subr.mxu0 0.0
        %674 = vmatpush1.msra.mxu0 0.0
        %675 = vmatprep.subr.mxu0 0.0
        %676 = vmatpush1.msra.mxu0 0.0
        %677 = vmatprep.subr.mxu0 0.0
        %678 = vmatpush1.msra.mxu0 0.0
        %679 = vmatprep.subr.mxu0 0.0
        %680 = vmatpush1.msra.mxu0 0.0
        %681 = vmatprep.subr.mxu0 0.0
        %682 = vmatpush1.msra.mxu0 0.0
        %683 = vmatprep.subr.mxu0 0.0
        %684 = vmatpush1.msra.mxu0 0.0
        %685 = vmatprep.subr.mxu0 0.0
        %686 = vmatpush1.msra.mxu0 0.0
        %687 = vmatprep.subr.mxu0 0.0
        %688 = vmatpush1.msra.mxu0 0.0
        %689 = vmatprep.mubr.f32.mxu0 0.0
        %690 = vmatmul.mubr.f32.gmra.mrb[0].mxu0 %v578
        %v691 = vpop.f32.mrb[0].mxu0
        %v692 = vadd.f32 %v498, %v691
        %v693 = vpop.f32.mrb[0].mxu0
        %694 = vmatprep.mubr.f32.mxu0 0.0
        %695 = vmatmul.mubr.f32.gmra.mrb[0].mxu0 %v581
        %v696 = vpop.f32.mrb[0].mxu0
        %v697 = vadd.f32 %v503, %v696
        %v698 = vpop.f32.mrb[0].mxu0
        %699 = vmatprep.mubr.f32.mxu0 0.0
        %700 = vmatmul.mubr.f32.gmra.mrb[0].mxu0 %v584
        %v701 = vpop.f32.mrb[0].mxu0
        %v702 = vadd.f32 %v508, %v701
        %v703 = vpop.f32.mrb[0].mxu0
        %704 = vmatprep.mubr.f32.mxu0 0.0
        %705 = vmatmul.mubr.f32.gmra.mrb[0].mxu0 %v587
        %v706 = vpop.f32.mrb[0].mxu0
        %v707 = vadd.f32 %v513, %v706
        %v708 = vpop.f32.mrb[0].mxu0
        %709 = vmatprep.mubr.f32.mxu0 0.0
        %710 = vmatmul.mubr.f32.gmra.mrb[0].mxu0 %v590
        %v711 = vpop.f32.mrb[0].mxu0
        %v712 = vadd.f32 %v518, %v711
        %v713 = vpop.f32.mrb[0].mxu0
        %714 = vmatprep.mubr.f32.mxu0 0.0
        %715 = vmatmul.mubr.f32.gmra.mrb[0].mxu0 %v593
        %v716 = vpop.f32.mrb[0].mxu0
        %v717 = vadd.f32 %v523, %v716
        %v718 = vpop.f32.mrb[0].mxu0
        %719 = vmatprep.mubr.f32.mxu0 0.0
        %720 = vmatmul.mubr.f32.gmra.mrb[0].mxu0 %v596
        %v721 = vpop.f32.mrb[0].mxu0
        %v722 = vadd.f32 %v528, %v721
        %v723 = vpop.f32.mrb[0].mxu0
        %724 = vmatprep.mubr.f32.mxu0 0.0
        %725 = vmatmul.mubr.f32.gmra.mrb[0].mxu0 %v599
        %v726 = vpop.f32.mrb[0].mxu0
        %v727 = vadd.f32 %v533, %v726
        %v728 = vpop.f32.mrb[0].mxu0
        %729 = vmatprep.mubr.f32.mxu0 0.0
        %730 = vmatmul.mubr.f32.gmra.mrb[0].mxu0 %v602
        %v731 = vpop.f32.mrb[0].mxu0
        %v732 = vadd.f32 %v538, %v731
        %v733 = vpop.f32.mrb[0].mxu0
        %734 = vmatprep.mubr.f32.mxu0 0.0
        %735 = vmatmul.mubr.f32.gmra.mrb[0].mxu0 %v605
        %v736 = vpop.f32.mrb[0].mxu0
        %v737 = vadd.f32 %v543, %v736
        %v738 = vpop.f32.mrb[0].mxu0
        %739 = vmatprep.mubr.f32.mxu0 0.0
        %740 = vmatmul.mubr.f32.gmra.mrb[0].mxu0 %v608
        %v741 = vpop.f32.mrb[0].mxu0
        %v742 = vadd.f32 %v548, %v741
        %v743 = vpop.f32.mrb[0].mxu0
        %744 = vmatprep.mubr.f32.mxu0 0.0
        %745 = vmatmul.mubr.f32.gmra.mrb[0].mxu0 %v611
        %v746 = vpop.f32.mrb[0].mxu0
        %v747 = vadd.f32 %v553, %v746
        %v748 = vpop.f32.mrb[0].mxu0
        %749 = vmatprep.mubr.f32.mxu0 0.0
        %750 = vmatmul.mubr.f32.gmra.mrb[0].mxu0 %v614
        %v751 = vpop.f32.mrb[0].mxu0
        %v752 = vadd.f32 %v558, %v751
        %v753 = vpop.f32.mrb[0].mxu0
        %754 = vmatprep.mubr.f32.mxu0 0.0
        %755 = vmatmul.mubr.f32.gmra.mrb[0].mxu0 %v617
        %v756 = vpop.f32.mrb[0].mxu0
        %v757 = vadd.f32 %v563, %v756
        %v758 = vpop.f32.mrb[0].mxu0
        %759 = vmatprep.mubr.f32.mxu0 0.0
        %760 = vmatmul.mubr.f32.gmra.mrb[0].mxu0 %v620
        %v761 = vpop.f32.mrb[0].mxu0
        %v762 = vadd.f32 %v568, %v761
        %v763 = vpop.f32.mrb[0].mxu0
        %764 = vmatprep.mubr.f32.mxu0 0.0
        %765 = vmatmul.mubr.f32.gmra.mrb[0].mxu0 %v623
        %v766 = vpop.f32.mrb[0].mxu0
        %v767 = vadd.f32 %v573, %v766
        %v768 = vpop.f32.mrb[0].mxu0
        %769 = vdwg.mxu0
        %v770 = vld [vmem:[%s4] sm:$0xff]
        %v771 = vld [vmem:[%s4 + $0x8] sm:$0xff]
        %v772 = vld [vmem:[%s4 + $0x10] sm:$0xff]
        %v773 = vld [vmem:[%s4 + $0x18] sm:$0xff]
        %v774 = vld [vmem:[%s4 + $0x20] sm:$0xff]
        %v775 = vld [vmem:[%s4 + $0x28] sm:$0xff]
        %v776 = vld [vmem:[%s4 + $0x30] sm:$0xff]
        %v777 = vld [vmem:[%s4 + $0x38] sm:$0xff]
        %v778 = vld [vmem:[%s4 + $0x40] sm:$0xff]
        %v779 = vld [vmem:[%s4 + $0x48] sm:$0xff]
        %v780 = vld [vmem:[%s4 + $0x50] sm:$0xff]
        %v781 = vld [vmem:[%s4 + $0x58] sm:$0xff]
        %v782 = vld [vmem:[%s4 + $0x60] sm:$0xff]
        %v783 = vld [vmem:[%s4 + $0x68] sm:$0xff]
        %v784 = vld [vmem:[%s4 + $0x70] sm:$0xff]
        %v785 = vld [vmem:[%s4 + $0x78] sm:$0xff]
        %v786 = vadd.f32 %v692, %v770
        %v787 = vadd.f32 %v697, %v771
        %v788 = vadd.f32 %v702, %v772
        %v789 = vadd.f32 %v707, %v773
        %v790 = vadd.f32 %v712, %v774
        %v791 = vadd.f32 %v717, %v775
        %v792 = vadd.f32 %v722, %v776
        %v793 = vadd.f32 %v727, %v777
        %v794 = vadd.f32 %v732, %v778
        %v795 = vadd.f32 %v737, %v779
        %v796 = vadd.f32 %v742, %v780
        %v797 = vadd.f32 %v747, %v781
        %v798 = vadd.f32 %v752, %v782
        %v799 = vadd.f32 %v757, %v783
        %v800 = vadd.f32 %v762, %v784
        %v801 = vadd.f32 %v767, %v785
        %v802 = vmax.f32 %v786, 0.0
        %v803 = vmax.f32 %v787, 0.0
        %v804 = vmax.f32 %v788, 0.0
        %v805 = vmax.f32 %v789, 0.0
        %v806 = vmax.f32 %v790, 0.0
        %v807 = vmax.f32 %v791, 0.0
        %v808 = vmax.f32 %v792, 0.0
        %v809 = vmax.f32 %v793, 0.0
        %v810 = vmax.f32 %v794, 0.0
        %v811 = vmax.f32 %v795, 0.0
        %v812 = vmax.f32 %v796, 0.0
        %v813 = vmax.f32 %v797, 0.0
        %v814 = vmax.f32 %v798, 0.0
        %v815 = vmax.f32 %v799, 0.0
        %v816 = vmax.f32 %v800, 0.0
        %v817 = vmax.f32 %v801, 0.0
        %v818 = vld [vmem:[%s5] sm:$0xff]
        %v819 = vld [vmem:[%s5 + $0x8] sm:$0xff]
        %v820 = vld [vmem:[%s5 + $0x10] sm:$0xff]
        %v821 = vld [vmem:[%s5 + $0x18] sm:$0xff]
        %v822 = vld [vmem:[%s5 + $0x20] sm:$0xff]
        %v823 = vld [vmem:[%s5 + $0x28] sm:$0xff]
        %v824 = vld [vmem:[%s5 + $0x30] sm:$0xff]
        %v825 = vld [vmem:[%s5 + $0x38] sm:$0xff]
        %v826 = vld [vmem:[%s6] sm:$0xff]
        %v827 = vld [vmem:[%s6 + $0x8] sm:$0xff]
        %v828 = vld [vmem:[%s6 + $0x10] sm:$0xff]
        %v829 = vld [vmem:[%s6 + $0x18] sm:$0xff]
        %v830 = vld [vmem:[%s6 + $0x20] sm:$0xff]
        %v831 = vld [vmem:[%s6 + $0x28] sm:$0xff]
        %v832 = vld [vmem:[%s6 + $0x30] sm:$0xff]
        %v833 = vld [vmem:[%s6 + $0x38] sm:$0xff]
        %834 = vmatprep.subr.mxu0 0.0
        %835 = vmatpush1.msra.mxu0 %v802
        %836 = vmatprep.subr.mxu0 0.0
        %837 = vmatpush1.msra.mxu0 %v803
        %838 = vmatprep.subr.mxu0 0.0
        %839 = vmatpush1.msra.mxu0 %v804
        %840 = vmatprep.subr.mxu0 0.0
        %841 = vmatpush1.msra.mxu0 %v805
        %842 = vmatprep.subr.mxu0 0.0
        %843 = vmatpush1.msra.mxu0 %v806
        %844 = vmatprep.subr.mxu0 0.0
        %845 = vmatpush1.msra.mxu0 %v807
        %846 = vmatprep.subr.mxu0 0.0
        %847 = vmatpush1.msra.mxu0 %v808
        %848 = vmatprep.subr.mxu0 0.0
        %849 = vmatpush1.msra.mxu0 %v809
        %850 = vmatprep.subr.mxu0 0.0
        %851 = vmatpush1.msra.mxu0 %v810
        %852 = vmatprep.subr.mxu0 0.0
        %853 = vmatpush1.msra.mxu0 %v811
        %854 = vmatprep.subr.mxu0 0.0
        %855 = vmatpush1.msra.mxu0 %v812
        %856 = vmatprep.subr.mxu0 0.0
        %857 = vmatpush1.msra.mxu0 %v813
        %858 = vmatprep.subr.mxu0 0.0
        %859 = vmatpush1.msra.mxu0 %v814
        %860 = vmatprep.subr.mxu0 0.0
        %861 = vmatpush1.msra.mxu0 %v815
        %862 = vmatprep.subr.mxu0 0.0
        %863 = vmatpush1.msra.mxu0 %v816
        %864 = vmatprep.subr.mxu0 0.0
        %865 = vmatpush1.msra.mxu0 %v817
        %866 = vmatprep.subr.mxu0 0.0
        %867 = vmatpush1.msra.mxu0 0.0
        %868 = vmatprep.subr.mxu0 0.0
        %869 = vmatpush1.msra.mxu0 0.0
        %870 = vmatprep.subr.mxu0 0.0
        %871 = vmatpush1.msra.mxu0 0.0
        %872 = vmatprep.subr.mxu0 0.0
        %873 = vmatpush1.msra.mxu0 0.0
        %874 = vmatprep.subr.mxu0 0.0
        %875 = vmatpush1.msra.mxu0 0.0
        %876 = vmatprep.subr.mxu0 0.0
        %877 = vmatpush1.msra.mxu0 0.0
        %878 = vmatprep.subr.mxu0 0.0
        %879 = vmatpush1.msra.mxu0 0.0
        %880 = vmatprep.subr.mxu0 0.0
        %881 = vmatpush1.msra.mxu0 0.0
        %882 = vmatprep.subr.mxu0 0.0
        %883 = vmatpush1.msra.mxu0 0.0
        %884 = vmatprep.subr.mxu0 0.0
        %885 = vmatpush1.msra.mxu0 0.0
        %886 = vmatprep.subr.mxu0 0.0
        %887 = vmatpush1.msra.mxu0 0.0
        %888 = vmatprep.subr.mxu0 0.0
        %889 = vmatpush1.msra.mxu0 0.0
        %890 = vmatprep.subr.mxu0 0.0
        %891 = vmatpush1.msra.mxu0 0.0
        %892 = vmatprep.subr.mxu0 0.0
        %893 = vmatpush1.msra.mxu0 0.0
        %894 = vmatprep.subr.mxu0 0.0
        %895 = vmatpush1.msra.mxu0 0.0
        %896 = vmatprep.subr.mxu0 0.0
        %897 = vmatpush1.msra.mxu0 0.0
        %898 = vmatprep.mubr.f32.mxu0 0.0
        %899 = vmatmul.mubr.f32.gmra.mrb[0].mxu0 %v818
        %v900 = vpop.f32.mrb[0].mxu0
        %v901 = vadd.f32 %v826, %v900
        %v902 = vpop.f32.mrb[0].mxu0
        %903 = vmatprep.mubr.f32.mxu0 0.0
        %904 = vmatmul.mubr.f32.gmra.mrb[0].mxu0 %v819
        %v905 = vpop.f32.mrb[0].mxu0
        %v906 = vadd.f32 %v827, %v905
        %v907 = vpop.f32.mrb[0].mxu0
        %908 = vmatprep.mubr.f32.mxu0 0.0
        %909 = vmatmul.mubr.f32.gmra.mrb[0].mxu0 %v820
        %v910 = vpop.f32.mrb[0].mxu0
        %v911 = vadd.f32 %v828, %v910
        %v912 = vpop.f32.mrb[0].mxu0
        %913 = vmatprep.mubr.f32.mxu0 0.0
        %914 = vmatmul.mubr.f32.gmra.mrb[0].mxu0 %v821
        %v915 = vpop.f32.mrb[0].mxu0
        %v916 = vadd.f32 %v829, %v915
        %v917 = vpop.f32.mrb[0].mxu0
        %918 = vmatprep.mubr.f32.mxu0 0.0
        %919 = vmatmul.mubr.f32.gmra.mrb[0].mxu0 %v822
        %v920 = vpop.f32.mrb[0].mxu0
        %v921 = vadd.f32 %v830, %v920
        %v922 = vpop.f32.mrb[0].mxu0
        %923 = vmatprep.mubr.f32.mxu0 0.0
        %924 = vmatmul.mubr.f32.gmra.mrb[0].mxu0 %v823
        %v925 = vpop.f32.mrb[0].mxu0
        %v926 = vadd.f32 %v831, %v925
        %v927 = vpop.f32.mrb[0].mxu0
        %928 = vmatprep.mubr.f32.mxu0 0.0
        %929 = vmatmul.mubr.f32.gmra.mrb[0].mxu0 %v824
        %v930 = vpop.f32.mrb[0].mxu0
        %v931 = vadd.f32 %v832, %v930
        %v932 = vpop.f32.mrb[0].mxu0
        %933 = vmatprep.mubr.f32.mxu0 0.0
        %934 = vmatmul.mubr.f32.gmra.mrb[0].mxu0 %v825
        %v935 = vpop.f32.mrb[0].mxu0
        %v936 = vadd.f32 %v833, %v935
        %v937 = vpop.f32.mrb[0].mxu0
        %938 = vdwg.mxu0
        %v939 = vxor.u32 %v901, 2147483648
        %v940 = vxor.u32 %v906, 2147483648
        %v941 = vxor.u32 %v911, 2147483648
        %v942 = vxor.u32 %v916, 2147483648
        %v943 = vxor.u32 %v921, 2147483648
        %v944 = vxor.u32 %v926, 2147483648
        %v945 = vxor.u32 %v931, 2147483648
        %v946 = vxor.u32 %v936, 2147483648
        %v947 = vmul.f32 %v939, 1.442695
        %v948 = vpow.pop %v947
        %v949 = vmul.f32 %v940, 1.442695
        %v950 = vpow.pop %v949
        %v951 = vmul.f32 %v941, 1.442695
        %v952 = vpow.pop %v951
        %v953 = vmul.f32 %v942, 1.442695
        %v954 = vpow.pop %v953
        %v955 = vmul.f32 %v943, 1.442695
        %v956 = vpow.pop %v955
        %v957 = vmul.f32 %v944, 1.442695
        %v958 = vpow.pop %v957
        %v959 = vmul.f32 %v945, 1.442695
        %v960 = vpow.pop %v959
        %v961 = vmul.f32 %v946, 1.442695
        %v962 = vpow.pop %v961
        %v963 = vadd.f32 %v948, 1.0
        %v964 = vadd.f32 %v950, 1.0
        %v965 = vadd.f32 %v952, 1.0
        %v966 = vadd.f32 %v954, 1.0
        %v967 = vadd.f32 %v956, 1.0
        %v968 = vadd.f32 %v958, 1.0
        %v969 = vadd.f32 %v960, 1.0
        %v970 = vadd.f32 %v962, 1.0
        %v971 = vrcp.pop %v963
        %v972 = vmul.f32 1.0, %v971
        %v973 = vrcp.pop %v964
        %v974 = vmul.f32 1.0, %v973
        %v975 = vrcp.pop %v965
        %v976 = vmul.f32 1.0, %v975
        %v977 = vrcp.pop %v966
        %v978 = vmul.f32 1.0, %v977
        %v979 = vrcp.pop %v967
        %v980 = vmul.f32 1.0, %v979
        %v981 = vrcp.pop %v968
        %v982 = vmul.f32 1.0, %v981
        %v983 = vrcp.pop %v969
        %v984 = vmul.f32 1.0, %v983
        %v985 = vrcp.pop %v970
        %v986 = vmul.f32 1.0, %v985
        %988 = vset.pattern.permute.xlu0 0
        %989 = vperm.xlu0 %988, %v972
        %v990 = vpop.permute.xlu0 %989
        %993 = vset.pattern.permute.xlu0 0
        %994 = vperm.xlu0 %993, %v974
        %v995 = vpop.permute.xlu0 %994
        %998 = vset.pattern.permute.xlu0 0
        %999 = vperm.xlu0 %998, %v976
        %v1000 = vpop.permute.xlu0 %999
        %1003 = vset.pattern.permute.xlu0 0
        %1004 = vperm.xlu0 %1003, %v978
        %v1005 = vpop.permute.xlu0 %1004
        %1008 = vset.pattern.permute.xlu0 0
        %1009 = vperm.xlu0 %1008, %v980
        %v1010 = vpop.permute.xlu0 %1009
        %1013 = vset.pattern.permute.xlu0 0
        %1014 = vperm.xlu0 %1013, %v982
        %v1015 = vpop.permute.xlu0 %1014
        %1018 = vset.pattern.permute.xlu0 0
        %1019 = vperm.xlu0 %1018, %v984
        %v1020 = vpop.permute.xlu0 %1019
        %1023 = vset.pattern.permute.xlu0 0
        %1024 = vperm.xlu0 %1023, %v986
        %v1025 = vpop.permute.xlu0 %1024
        %v1027 = vmul.f32 %v297, %v990
        %v1028 = vmul.f32 %v298, %v990
        %v1029 = vmul.f32 %v299, %v995
        %v1030 = vmul.f32 %v300, %v995
        %v1031 = vmul.f32 %v301, %v1000
        %v1032 = vmul.f32 %v302, %v1000
        %v1033 = vmul.f32 %v303, %v1005
        %v1034 = vmul.f32 %v304, %v1005
        %v1035 = vmul.f32 %v305, %v1010
        %v1036 = vmul.f32 %v306, %v1010
        %v1037 = vmul.f32 %v307, %v1015
        %v1038 = vmul.f32 %v308, %v1015
        %v1039 = vmul.f32 %v309, %v1020
        %v1040 = vmul.f32 %v310, %v1020
        %v1041 = vmul.f32 %v311, %v1025
        %v1042 = vmul.f32 %v312, %v1025
        %1043 = vst [vmem:[%s286] sm:$0xff] %v1027
        %1044 = vst [vmem:[%s286 + $0x8] sm:$0xff] %v1028
        %1045 = vst [vmem:[%s286 + $0x10] sm:$0xff] %v1029
        %1046 = vst [vmem:[%s286 + $0x18] sm:$0xff] %v1030
        %1047 = vst [vmem:[%s286 + $0x20] sm:$0xff] %v1031
        %1048 = vst [vmem:[%s286 + $0x28] sm:$0xff] %v1032
        %1049 = vst [vmem:[%s286 + $0x30] sm:$0xff] %v1033
        %1050 = vst [vmem:[%s286 + $0x38] sm:$0xff] %v1034
        %1051 = vst [vmem:[%s286 + $0x40] sm:$0xff] %v1035
        %1052 = vst [vmem:[%s286 + $0x48] sm:$0xff] %v1036
        %1053 = vst [vmem:[%s286 + $0x50] sm:$0xff] %v1037
        %1054 = vst [vmem:[%s286 + $0x58] sm:$0xff] %v1038
        %1055 = vst [vmem:[%s286 + $0x60] sm:$0xff] %v1039
        %1056 = vst [vmem:[%s286 + $0x68] sm:$0xff] %v1040
        %1057 = vst [vmem:[%s286 + $0x70] sm:$0xff] %v1041
        %1058 = vst [vmem:[%s286 + $0x78] sm:$0xff] %v1042
        %s1059 = sand.u32 %s186, 1
        %s1060 = scalar_lea.sflag [#allocation3], %s1059
        %s1061 = sand.u32 %s186, 1
        %s1062 = smul.addr %s1061, 128
        %s1063 = scalar_lea.vmem [#allocation2], %s1062
        // Predicated region
        $region49: #{tpu_custom_call.1} parent=47 // pred_check
          %p1064 = pneg %p196
        $region50: #{tpu_custom_call.1} parent=47 // pred_check_branch
          %1066 = sbr.rel (%p1064) target = $region52
        $region51: #{tpu_custom_call.1} parent=47 // pred_region
          %s1068 = ssub.s32 2048, 2048
          %1069 = vsyncadd %s1060, %s1068
          %s1070 = smul.addr %s21, 16
          %s1071 = smul.addr %s1070, 128
          %s1072 = scalar_lea.hbm %s7, %s1071
          %s1073 = sshll.u32 %s1063, 4
          %s1074 = int_to_ptr.vmem [resolvable:$true] %s1073
          %1079 = dma.vmem_to_hbm [thread:$0]  %s1074, 2048, %s1072, %s1060, 256, 256, 16
        $region52: #{tpu_custom_call.1} parent=47 // pred_fallthru
          _
      $region48: #{tpu_custom_call.1} parent=5 // pred_fallthru
        _
      %p1080 = scmp.le.s32.totalorder 2, %s16
      // Predicated region
      $region53: #{tpu_custom_call.1} parent=5 // pred_check
        %p1081 = pneg %p1080
      $region54: #{tpu_custom_call.1} parent=5 // pred_check_branch
        %1083 = sbr.rel (%p1081) target = $region56
      $region55: #{tpu_custom_call.1} parent=5 // pred_region
        %s1084 = ssub.s32 %s16, 2
        // Predicated region
        $region57: #{tpu_custom_call.1} parent=55 // pred_check
          %p1085 = pneg %p202
        $region58: #{tpu_custom_call.1} parent=55 // pred_check_branch
          %1087 = sbr.rel (%p1085) target = $region60
        $region59: #{tpu_custom_call.1} parent=55 // pred_region
          %s1088 = sand.u32 %s187, 1
          %s1089 = scalar_lea.sflag [#allocation3], %s1088
          %s1090 = sand.u32 %s187, 1
          %s1091 = smul.addr %s1090, 128
          %s1092 = scalar_lea.vmem [#allocation2], %s1091
          %1093 = dma.done %s1089, 2048
        $region60: #{tpu_custom_call.1} parent=55 // pred_fallthru
          _
      $region56: #{tpu_custom_call.1} parent=5 // pred_fallthru
        _
    $region6: #{tpu_custom_call.1} parent=1 // loop_footer
      %s20 = sadd.s32 1, %s16
    $region7: #{tpu_custom_call.1} parent=1 // loop_footer_branch
      %15 = sbr.rel target = $region3
    $region8: #{tpu_custom_call.1} parent=1 // loop_exit
      _
    %1094 = vsyncpa [#allocation3], 1
    %s1095 = scalar_lea.sflag [#allocation3], 1
    %1096 = vsyncpa %s1095, 1

</llo_original>
